<compile_context>
chip_gen: v6e
topology: v6e:2x2x1
jax: 0.10.0
libtpu: 0.0.40
codegen_flags: <defaults>
</compile_context>

<pallas_src>
import jax
import jax.numpy as jnp
from jax.experimental import pallas as pl
from jax.experimental.pallas import tpu as pltpu

HIDDEN = 50            # nn.LSTMCell(1, 50)
INPUT_SIZE = 1
GATES = 4 * HIDDEN     # 200 (PyTorch layout)
GP = 128               # gate pitch: each gate starts on a 128-lane boundary
GATES_PAD = 4 * GP     # 512
K_PAD = 128            # padded contraction dim: h in lanes [0,50)
X_LANE = 64            # padding lane where the scalar input x_t is injected
BIAS_LANE = 127        # padding lane carrying the constant 1.0 (bias folding)
N_STEPS = 3            # the module reads input[:, 0..2, :]
X_COLS = 8             # x shipped as (Bp, 8): column t holds x_t, rest zero
TB_CAP = 1024          # max batch-tile rows per grid step

# x / bias injection lanes must live in the hidden-padding region.
assert HIDDEN <= X_LANE < BIAS_LANE < K_PAD


def _fused_cell(x_blk, h, c, w_cat):
    """One LSTMCell step; gates via a single lane-aligned MXU matmul.

    x_blk : (TB, 128)  zeros except x_t at lane X_LANE and 1.0 at BIAS_LANE
    h, c  : (TB, 128)  valid state in lanes [0, HIDDEN); padding lanes stay 0
    w_cat : (128, 512) rows [0,50) = W_hh^T, row X_LANE = W_ih^T,
                       row BIAS_LANE = b_ih + b_hh (gate-padded)
    """
    xh = h + x_blk  # h's padding lanes are zero -> packs x_t and the 1.0 in
    gates = jnp.dot(xh, w_cat, preferred_element_type=jnp.float32)
    i = jax.nn.sigmoid(gates[:, 0 * GP:1 * GP])
    f = jax.nn.sigmoid(gates[:, 1 * GP:2 * GP])
    g = jnp.tanh(gates[:, 2 * GP:3 * GP])
    o = jax.nn.sigmoid(gates[:, 3 * GP:4 * GP])
    c_new = f * c + i * g          # padding lanes: 0.5*0 + 0.5*0 = 0
    h_new = o * jnp.tanh(c_new)    # padding lanes: 0.5*tanh(0) = 0
    return h_new, c_new


def lstm_kernel(x_ref, w1_ref, w2_ref, w3_ref, wfc_ref, out_ref):
    # Hoisted constant (1,128) injection masks (cheap iota compares).
    lane = jax.lax.broadcasted_iota(jnp.int32, (1, K_PAD), 1)
    x_onehot = (lane == X_LANE).astype(jnp.float32)
    one_blk = (lane == BIAS_LANE).astype(jnp.float32)

    def inject(t):
        # (TB,1) lane-broadcast * one-hot mask + bias lane -> (TB,128)
        return x_ref[:, t:t + 1] * x_onehot + one_blk

    x0 = inject(0)
    x1 = inject(1)
    x2 = inject(2)

    # ---- cell 1, specialized for h0 = c0 = 0: forget-gate path is dead ----
    gates1 = jnp.dot(x0, w1_ref[...], preferred_element_type=jnp.float32)
    i1 = jax.nn.sigmoid(gates1[:, 0 * GP:1 * GP])
    g1 = jnp.tanh(gates1[:, 2 * GP:3 * GP])
    o1 = jax.nn.sigmoid(gates1[:, 3 * GP:4 * GP])
    c = i1 * g1
    h = o1 * jnp.tanh(c)

    # ---- cells 2 and 3: fused [h | x | 1] matmul per cell ----
    h, c = _fused_cell(x1, h, c, w2_ref[...])
    h, c = _fused_cell(x2, h, c, w3_ref[...])

    # ---- fc: Linear(50, 1) on the MXU; bias folded via the 1.0 lane.
    # Lane-dense write of the full padded slab (column 0 is the real output).
    h_aug = h + one_blk
    out_ref[...] = jnp.dot(h_aug, wfc_ref[...], preferred_element_type=jnp.float32)


# --------------------------------------------------------------------------
# Wrapper: layout plumbing (one-off) + pallas_call with a batch grid.
# --------------------------------------------------------------------------
def _round_up(n, m):
    return (n + m - 1) // m * m


def _pack_cell(w_ih, w_hh, b_ih, b_hh):
    """PyTorch LSTMCell params -> lane-aligned fused weight (128, 512).

    Rows [0,50) = W_hh^T, row X_LANE = W_ih^T, row BIAS_LANE = b_ih + b_hh,
    each gate padded to a 128-lane pitch.
    """
    w_cat = jnp.zeros((K_PAD, GATES_PAD), jnp.float32)
    b = (b_ih + b_hh).astype(jnp.float32)
    for g in range(4):
        w_cat = w_cat.at[:HIDDEN, g * GP:g * GP + HIDDEN].set(
            w_hh[g * HIDDEN:(g + 1) * HIDDEN, :].T.astype(jnp.float32))
        w_cat = w_cat.at[X_LANE, g * GP:g * GP + HIDDEN].set(
            w_ih[g * HIDDEN:(g + 1) * HIDDEN, 0].astype(jnp.float32))
        w_cat = w_cat.at[BIAS_LANE, g * GP:g * GP + HIDDEN].set(
            b[g * HIDDEN:(g + 1) * HIDDEN])
    return w_cat


def simple_lstm_forward(x, p):
    """x: (B, T, 1) float32 with T >= 3 (only timesteps 0..2 are used). Returns (B, 1)."""
    B, T, _ = x.shape
    assert T >= N_STEPS, "module consumes input[:, 0..2, :]"

    w1 = _pack_cell(p["w_ih1"], p["w_hh1"], p["b_ih1"], p["b_hh1"])
    w2 = _pack_cell(p["w_ih2"], p["w_hh2"], p["b_ih2"], p["b_hh2"])
    w3 = _pack_cell(p["w_ih3"], p["w_hh3"], p["b_ih3"], p["b_hh3"])
    wfc = (jnp.zeros((K_PAD, K_PAD), jnp.float32)
           .at[:HIDDEN, 0].set(p["fc_w"][0].astype(jnp.float32))
           .at[BIAS_LANE, 0].set(p["fc_b"][0].astype(jnp.float32)))

    # Batch tiling: big tiles (grid overhead ~0.35 us/step dominates small
    # tiles) but at least 2 grid steps at large B so v7x's 2 TCs both work.
    TB = min(TB_CAP, _round_up(max(1, -(-B // 2)), 8))
    Bp = _round_up(B, TB)

    # Tiny packed input: column t holds x_t; padded batch rows stay zero.
    x_in = (jnp.zeros((Bp, X_COLS), jnp.float32)
            .at[:B, :N_STEPS].set(x[:, :N_STEPS, 0].astype(jnp.float32)))

    def resident(shape):
        # Weight blocks: full array, constant index_map -> stay resident in VMEM.
        return pl.BlockSpec(shape, lambda i: (0, 0))

    out = pl.pallas_call(
        lstm_kernel,
        out_shape=jax.ShapeDtypeStruct((Bp, K_PAD), jnp.float32),
        grid=(Bp // TB,),
        in_specs=[
            pl.BlockSpec((TB, X_COLS), lambda i: (i, 0)),   # x tiles (tiny)
            resident((K_PAD, GATES_PAD)),                   # cell 1 fused W+b
            resident((K_PAD, GATES_PAD)),                   # cell 2 fused W+b
            resident((K_PAD, GATES_PAD)),                   # cell 3 fused W+b
            resident((K_PAD, K_PAD)),                       # fc weight+bias (padded)
        ],
        out_specs=pl.BlockSpec((TB, K_PAD), lambda i: (i, 0)),  # lane-dense output
        compiler_params=pltpu.CompilerParams(
            dimension_semantics=("parallel",),              # 2 TCs on v7x
            vmem_limit_bytes=32 * 1024 * 1024),
    )(x_in, w1, w2, w3, wfc)
    return out[:B, 0:1]


# --------------------------------------------------------------------------
# Deterministic init (PyTorch-layout params) and pure-JAX reference.
# --------------------------------------------------------------------------
def init_params(key):
    """Mimics PyTorch's U(-1/sqrt(H), 1/sqrt(H)) init, in PyTorch layouts."""
    bound = 1.0 / jnp.sqrt(jnp.float32(HIDDEN))

    def u(k, shape):
        return jax.random.uniform(k, shape, jnp.float32, -bound, bound)

    keys = jax.random.split(key, 14)
    p = {}
    for cell, koff in zip((1, 2, 3), (0, 4, 8)):
        p[f"w_ih{cell}"] = u(keys[koff + 0], (GATES, INPUT_SIZE))
        p[f"w_hh{cell}"] = u(keys[koff + 1], (GATES, HIDDEN))
        p[f"b_ih{cell}"] = u(keys[koff + 2], (GATES,))
        p[f"b_hh{cell}"] = u(keys[koff + 3], (GATES,))
    p["fc_w"] = u(keys[12], (1, HIDDEN))
    p["fc_b"] = u(keys[13], (1,))
    return p


def _reference_forward(x, p):
    """Pure-JAX reference matching PyTorch LSTMCell semantics."""
    def cell(xt, h, c, w_ih, w_hh, b_ih, b_hh):
        gates = xt @ w_ih.T + b_ih + h @ w_hh.T + b_hh
        i, f, g, o = jnp.split(gates, 4, axis=-1)
        c_new = jax.nn.sigmoid(f) * c + jax.nn.sigmoid(i) * jnp.tanh(g)
        h_new = jax.nn.sigmoid(o) * jnp.tanh(c_new)
        return h_new, c_new

    B = x.shape[0]
    h = jnp.zeros((B, HIDDEN), jnp.float32)
    c = jnp.zeros((B, HIDDEN), jnp.float32)
    h, c = cell(x[:, 0, :], h, c, p["w_ih1"], p["w_hh1"], p["b_ih1"], p["b_hh1"])
    h, c = cell(x[:, 1, :], h, c, p["w_ih2"], p["w_hh2"], p["b_ih2"], p["b_hh2"])
    h, c = cell(x[:, 2, :], h, c, p["w_ih3"], p["w_hh3"], p["b_ih3"], p["b_hh3"])
    return h @ p["fc_w"].T + p["fc_b"]


if __name__ == "__main__":
    key = jax.random.PRNGKey(0)
    k_x, k_x2, k_p = jax.random.split(key, 3)
    params = init_params(k_p)

    # Small sanity shape, matching the module spec (B, T=3, input_size=1).
    B, T = 2, 3
    x = jax.random.normal(k_x, (B, T, INPUT_SIZE), dtype=jnp.float32)
    out = jax.block_until_ready(simple_lstm_forward(x, params))
    ref = _reference_forward(x, params)
    assert out.shape == (B, 1)
    assert jnp.allclose(out, ref, atol=1e-5, rtol=1e-5), (out, ref)

    # Ragged batch exercising grid > 1 and batch padding.
    B2 = 37
    x2 = jax.random.normal(k_x2, (B2, T, INPUT_SIZE), dtype=jnp.float32)
    out2 = jax.block_until_ready(simple_lstm_forward(x2, params))
    ref2 = _reference_forward(x2, params)
    assert out2.shape == (B2, 1)
    assert jnp.allclose(out2, ref2, atol=1e-5, rtol=1e-5)

    print("KERNEL_OK")
</pallas_src>

<mosaic_0001>
module attributes {stable_mosaic.version = 11 : i64} {
  func.func @lstm_kernel(%arg0: i32, %arg1: memref<8x8xf32, #tpu.memory_space<vmem>>, %arg2: memref<128x512xf32, #tpu.memory_space<vmem>>, %arg3: memref<128x512xf32, #tpu.memory_space<vmem>>, %arg4: memref<128x512xf32, #tpu.memory_space<vmem>>, %arg5: memref<128x128xf32, #tpu.memory_space<vmem>>, %arg6: memref<8x128xf32, #tpu.memory_space<vmem>>) attributes {dimension_semantics = [#tpu.dimension_semantics<parallel>], iteration_bounds = array<i64: 1>, scalar_prefetch = 0 : i64, scratch_operands = 0 : i64, tpu.core_type = #tpu.core_type<tc>, window_params = [{transform_indices = @transform_0, window_bounds = array<i64: 8, 8>}, {pipeline_mode = #tpu.pipeline_mode<synchronous>, transform_indices = @transform_1, window_bounds = array<i64: 128, 512>}, {pipeline_mode = #tpu.pipeline_mode<synchronous>, transform_indices = @transform_2, window_bounds = array<i64: 128, 512>}, {pipeline_mode = #tpu.pipeline_mode<synchronous>, transform_indices = @transform_3, window_bounds = array<i64: 128, 512>}, {pipeline_mode = #tpu.pipeline_mode<synchronous>, transform_indices = @transform_4, window_bounds = array<i64: 128, 128>}, {transform_indices = @transform_5, window_bounds = array<i64: 8, 128>}]} {
    %0 = tpu.iota {dimensions = array<i32: 1>} : vector<1x128xi32>
    %c64_i32 = arith.constant 64 : i32
    %1 = vector.broadcast %c64_i32 : i32 to vector<1x128xi32>
    %2 = arith.cmpi eq, %0, %1 : vector<1x128xi32>
    %3 = arith.extui %2 : vector<1x128xi1> to vector<1x128xi32>
    %4 = arith.sitofp %3 : vector<1x128xi32> to vector<1x128xf32>
    %c127_i32 = arith.constant 127 : i32
    %5 = vector.broadcast %c127_i32 : i32 to vector<1x128xi32>
    %6 = arith.cmpi eq, %0, %5 : vector<1x128xi32>
    %7 = arith.extui %6 : vector<1x128xi1> to vector<1x128xi32>
    %8 = arith.sitofp %7 : vector<1x128xi32> to vector<1x128xf32>
    %c0 = arith.constant 0 : index
    %c0_0 = arith.constant 0 : index
    %9 = vector.load %arg1[%c0, %c0_0] : memref<8x8xf32, #tpu.memory_space<vmem>>, vector<8x1xf32>
    %10 = vector.broadcast %9 : vector<8x1xf32> to vector<8x128xf32>
    %11 = vector.broadcast %4 : vector<1x128xf32> to vector<8x128xf32>
    %12 = arith.mulf %10, %11 : vector<8x128xf32>
    %13 = vector.broadcast %8 : vector<1x128xf32> to vector<8x128xf32>
    %14 = arith.addf %12, %13 : vector<8x128xf32>
    %c0_1 = arith.constant 0 : index
    %c1 = arith.constant 1 : index
    %15 = vector.load %arg1[%c0_1, %c1] : memref<8x8xf32, #tpu.memory_space<vmem>>, vector<8x1xf32>
    %16 = vector.broadcast %15 : vector<8x1xf32> to vector<8x128xf32>
    %17 = vector.broadcast %4 : vector<1x128xf32> to vector<8x128xf32>
    %18 = arith.mulf %16, %17 : vector<8x128xf32>
    %19 = vector.broadcast %8 : vector<1x128xf32> to vector<8x128xf32>
    %20 = arith.addf %18, %19 : vector<8x128xf32>
    %c0_2 = arith.constant 0 : index
    %c2 = arith.constant 2 : index
    %21 = vector.load %arg1[%c0_2, %c2] : memref<8x8xf32, #tpu.memory_space<vmem>>, vector<8x1xf32>
    %22 = vector.broadcast %21 : vector<8x1xf32> to vector<8x128xf32>
    %23 = vector.broadcast %4 : vector<1x128xf32> to vector<8x128xf32>
    %24 = arith.mulf %22, %23 : vector<8x128xf32>
    %25 = vector.broadcast %8 : vector<1x128xf32> to vector<8x128xf32>
    %26 = arith.addf %24, %25 : vector<8x128xf32>
    %c0_3 = arith.constant 0 : index
    %c0_4 = arith.constant 0 : index
    %27 = vector.load %arg2[%c0_3, %c0_4] : memref<128x512xf32, #tpu.memory_space<vmem>>, vector<128x512xf32>
    %cst = arith.constant dense<0.000000e+00> : vector<8x512xf32>
    %28 = tpu.matmul %14, %27, %cst {dimension_numbers = #tpu.dot_dimension_numbers<[1], [0], [0], [1], [0, 0, 1, 1], [], []>} : vector<8x128xf32>, vector<128x512xf32>, vector<8x512xf32> -> vector<8x512xf32>
    %29 = vector.extract_strided_slice %28 {offsets = [0, 0], sizes = [8, 128], strides = [1, 1]} : vector<8x512xf32> to vector<8x128xf32>
    %30 = arith.negf %29 : vector<8x128xf32>
    %31 = math.exp %30 : vector<8x128xf32>
    %cst_5 = arith.constant 1.000000e+00 : f32
    %32 = vector.broadcast %cst_5 : f32 to vector<8x128xf32>
    %33 = arith.addf %32, %31 : vector<8x128xf32>
    %34 = arith.divf %32, %33 : vector<8x128xf32>
    %35 = vector.extract_strided_slice %28 {offsets = [0, 256], sizes = [8, 128], strides = [1, 1]} : vector<8x512xf32> to vector<8x128xf32>
    %36 = math.tanh %35 : vector<8x128xf32>
    %37 = vector.extract_strided_slice %28 {offsets = [0, 384], sizes = [8, 128], strides = [1, 1]} : vector<8x512xf32> to vector<8x128xf32>
    %38 = arith.negf %37 : vector<8x128xf32>
    %39 = math.exp %38 : vector<8x128xf32>
    %cst_6 = arith.constant 1.000000e+00 : f32
    %40 = vector.broadcast %cst_6 : f32 to vector<8x128xf32>
    %41 = arith.addf %40, %39 : vector<8x128xf32>
    %42 = arith.divf %40, %41 : vector<8x128xf32>
    %43 = arith.mulf %34, %36 : vector<8x128xf32>
    %44 = math.tanh %43 : vector<8x128xf32>
    %45 = arith.mulf %42, %44 : vector<8x128xf32>
    %c0_7 = arith.constant 0 : index
    %c0_8 = arith.constant 0 : index
    %46 = vector.load %arg3[%c0_7, %c0_8] : memref<128x512xf32, #tpu.memory_space<vmem>>, vector<128x512xf32>
    %47 = arith.addf %45, %20 : vector<8x128xf32>
    %cst_9 = arith.constant dense<0.000000e+00> : vector<8x512xf32>
    %48 = tpu.matmul %47, %46, %cst_9 {dimension_numbers = #tpu.dot_dimension_numbers<[1], [0], [0], [1], [0, 0, 1, 1], [], []>} : vector<8x128xf32>, vector<128x512xf32>, vector<8x512xf32> -> vector<8x512xf32>
    %49 = vector.extract_strided_slice %48 {offsets = [0, 0], sizes = [8, 128], strides = [1, 1]} : vector<8x512xf32> to vector<8x128xf32>
    %50 = arith.negf %49 : vector<8x128xf32>
    %51 = math.exp %50 : vector<8x128xf32>
    %cst_10 = arith.constant 1.000000e+00 : f32
    %52 = vector.broadcast %cst_10 : f32 to vector<8x128xf32>
    %53 = arith.addf %52, %51 : vector<8x128xf32>
    %54 = arith.divf %52, %53 : vector<8x128xf32>
    %55 = vector.extract_strided_slice %48 {offsets = [0, 128], sizes = [8, 128], strides = [1, 1]} : vector<8x512xf32> to vector<8x128xf32>
    %56 = arith.negf %55 : vector<8x128xf32>
    %57 = math.exp %56 : vector<8x128xf32>
    %cst_11 = arith.constant 1.000000e+00 : f32
    %58 = vector.broadcast %cst_11 : f32 to vector<8x128xf32>
    %59 = arith.addf %58, %57 : vector<8x128xf32>
    %60 = arith.divf %58, %59 : vector<8x128xf32>
    %61 = vector.extract_strided_slice %48 {offsets = [0, 256], sizes = [8, 128], strides = [1, 1]} : vector<8x512xf32> to vector<8x128xf32>
    %62 = math.tanh %61 : vector<8x128xf32>
    %63 = vector.extract_strided_slice %48 {offsets = [0, 384], sizes = [8, 128], strides = [1, 1]} : vector<8x512xf32> to vector<8x128xf32>
    %64 = arith.negf %63 : vector<8x128xf32>
    %65 = math.exp %64 : vector<8x128xf32>
    %cst_12 = arith.constant 1.000000e+00 : f32
    %66 = vector.broadcast %cst_12 : f32 to vector<8x128xf32>
    %67 = arith.addf %66, %65 : vector<8x128xf32>
    %68 = arith.divf %66, %67 : vector<8x128xf32>
    %69 = arith.mulf %60, %43 : vector<8x128xf32>
    %70 = arith.mulf %54, %62 : vector<8x128xf32>
    %71 = arith.addf %69, %70 : vector<8x128xf32>
    %72 = math.tanh %71 : vector<8x128xf32>
    %73 = arith.mulf %68, %72 : vector<8x128xf32>
    %c0_13 = arith.constant 0 : index
    %c0_14 = arith.constant 0 : index
    %74 = vector.load %arg4[%c0_13, %c0_14] : memref<128x512xf32, #tpu.memory_space<vmem>>, vector<128x512xf32>
    %75 = arith.addf %73, %26 : vector<8x128xf32>
    %cst_15 = arith.constant dense<0.000000e+00> : vector<8x512xf32>
    %76 = tpu.matmul %75, %74, %cst_15 {dimension_numbers = #tpu.dot_dimension_numbers<[1], [0], [0], [1], [0, 0, 1, 1], [], []>} : vector<8x128xf32>, vector<128x512xf32>, vector<8x512xf32> -> vector<8x512xf32>
    %77 = vector.extract_strided_slice %76 {offsets = [0, 0], sizes = [8, 128], strides = [1, 1]} : vector<8x512xf32> to vector<8x128xf32>
    %78 = arith.negf %77 : vector<8x128xf32>
    %79 = math.exp %78 : vector<8x128xf32>
    %cst_16 = arith.constant 1.000000e+00 : f32
    %80 = vector.broadcast %cst_16 : f32 to vector<8x128xf32>
    %81 = arith.addf %80, %79 : vector<8x128xf32>
    %82 = arith.divf %80, %81 : vector<8x128xf32>
    %83 = vector.extract_strided_slice %76 {offsets = [0, 128], sizes = [8, 128], strides = [1, 1]} : vector<8x512xf32> to vector<8x128xf32>
    %84 = arith.negf %83 : vector<8x128xf32>
    %85 = math.exp %84 : vector<8x128xf32>
    %cst_17 = arith.constant 1.000000e+00 : f32
    %86 = vector.broadcast %cst_17 : f32 to vector<8x128xf32>
    %87 = arith.addf %86, %85 : vector<8x128xf32>
    %88 = arith.divf %86, %87 : vector<8x128xf32>
    %89 = vector.extract_strided_slice %76 {offsets = [0, 256], sizes = [8, 128], strides = [1, 1]} : vector<8x512xf32> to vector<8x128xf32>
    %90 = math.tanh %89 : vector<8x128xf32>
    %91 = vector.extract_strided_slice %76 {offsets = [0, 384], sizes = [8, 128], strides = [1, 1]} : vector<8x512xf32> to vector<8x128xf32>
    %92 = arith.negf %91 : vector<8x128xf32>
    %93 = math.exp %92 : vector<8x128xf32>
    %cst_18 = arith.constant 1.000000e+00 : f32
    %94 = vector.broadcast %cst_18 : f32 to vector<8x128xf32>
    %95 = arith.addf %94, %93 : vector<8x128xf32>
    %96 = arith.divf %94, %95 : vector<8x128xf32>
    %97 = arith.mulf %88, %71 : vector<8x128xf32>
    %98 = arith.mulf %82, %90 : vector<8x128xf32>
    %99 = arith.addf %97, %98 : vector<8x128xf32>
    %100 = math.tanh %99 : vector<8x128xf32>
    %101 = arith.mulf %96, %100 : vector<8x128xf32>
    %102 = vector.broadcast %8 : vector<1x128xf32> to vector<8x128xf32>
    %103 = arith.addf %101, %102 : vector<8x128xf32>
    %c0_19 = arith.constant 0 : index
    %c0_20 = arith.constant 0 : index
    %104 = vector.load %arg5[%c0_19, %c0_20] : memref<128x128xf32, #tpu.memory_space<vmem>>, vector<128x128xf32>
    %cst_21 = arith.constant dense<0.000000e+00> : vector<8x128xf32>
    %105 = tpu.matmul %103, %104, %cst_21 {dimension_numbers = #tpu.dot_dimension_numbers<[1], [0], [0], [1], [0, 0, 1, 1], [], []>} : vector<8x128xf32>, vector<128x128xf32>, vector<8x128xf32> -> vector<8x128xf32>
    %c0_22 = arith.constant 0 : index
    %c0_23 = arith.constant 0 : index
    %106 = vector.load %arg6[%c0_22, %c0_23] : memref<8x128xf32, #tpu.memory_space<vmem>>, vector<8x128xf32>
    tpu.vector_store %arg6[%c0_22, %c0_23], %105 {strides = array<i32>} : memref<8x128xf32, #tpu.memory_space<vmem>>, vector<8x128xf32>,
    return
  }
  func.func @transform_0(%arg0: i32) -> (i32, i32) {
    %c0_i32 = arith.constant 0 : i32
    %c0_i32_0 = arith.constant 0 : i32
    return %arg0, %c0_i32 : i32, i32
  }
  func.func @transform_1(%arg0: i32) -> (i32, i32) {
    %c0_i32 = arith.constant 0 : i32
    %c0_i32_0 = arith.constant 0 : i32
    %c0_i32_1 = arith.constant 0 : i32
    return %c0_i32, %c0_i32_0 : i32, i32
  }
  func.func @transform_2(%arg0: i32) -> (i32, i32) {
    %c0_i32 = arith.constant 0 : i32
    %c0_i32_0 = arith.constant 0 : i32
    %c0_i32_1 = arith.constant 0 : i32
    return %c0_i32, %c0_i32_0 : i32, i32
  }
  func.func @transform_3(%arg0: i32) -> (i32, i32) {
    %c0_i32 = arith.constant 0 : i32
    %c0_i32_0 = arith.constant 0 : i32
    %c0_i32_1 = arith.constant 0 : i32
    return %c0_i32, %c0_i32_0 : i32, i32
  }
  func.func @transform_4(%arg0: i32) -> (i32, i32) {
    %c0_i32 = arith.constant 0 : i32
    %c0_i32_0 = arith.constant 0 : i32
    %c0_i32_1 = arith.constant 0 : i32
    return %c0_i32, %c0_i32_0 : i32, i32
  }
  func.func @transform_5(%arg0: i32) -> (i32, i32) {
    %c0_i32 = arith.constant 0 : i32
    %c0_i32_0 = arith.constant 0 : i32
    return %arg0, %c0_i32 : i32, i32
  }
}

</mosaic_0001>

<llo_original>
// kernel: tpu_custom_call.1
$region0: #{tpu_custom_call.1}
  #allocation0 [shape = 'u32[]', space=smem, size = 0x4, offset = 0x4, fixed_abs, tag = 'smem constant byte address 0x4 - core index']
  #allocation1 [shape = 'u32[144,128]{1,0:T(1,128)}', space=vmem, size = 0x12000, scoped, tag = 'internal scratch']
  %s0 = inlined_call_operand.hbm [shape: f32[8,8], index: 0, kind: input, shape index: {}]
  %s1 = inlined_call_operand.hbm [shape: f32[128,512], index: 1, kind: input, shape index: {}]
  %s2 = inlined_call_operand.hbm [shape: f32[128,512], index: 2, kind: input, shape index: {}]
  %s3 = inlined_call_operand.hbm [shape: f32[128,512], index: 3, kind: input, shape index: {}]
  %s4 = inlined_call_operand.hbm [shape: f32[128,128], index: 4, kind: input, shape index: {}]
  %s5 = inlined_call_operand.hbm [shape: f32[8,128], index: 5, kind: output, shape index: {}]
  %s6 = sld [smem:[#allocation0]]
  $region50: #{tpu_custom_call.1} parent=0
    _
  %s8 = ssub.s32 1, %s6
  %s9 = scalar_select 0, %s8, %s6
  $region1: #{tpu_custom_call.1} parent=0
    #allocation2 [shape = 'u8[4096]{0}', space=vmem, size = 0x1000, scoped, tag = 'input window, operand 0, single buffered']
    #allocation3 [shape = 's32[1]{0}', space=sflag, size = 0x4, scoped, tag = 'scoped memory for tpu_custom_call.1']
    #allocation4 [shape = 's32[1]{0}', space=sflag, size = 0x4, scoped, tag = 'scoped memory for tpu_custom_call.1']
    #allocation5 [shape = 'u8[262144]{0}', space=vmem, size = 0x40000, scoped, tag = 'input window, operand 1, single buffered']
    #allocation6 [shape = 's32[1]{0}', space=sflag, size = 0x4, scoped, tag = 'scoped memory for tpu_custom_call.1']
    #allocation7 [shape = 'u8[262144]{0}', space=vmem, size = 0x40000, scoped, tag = 'input window, operand 2, single buffered']
    #allocation8 [shape = 'u8[262144]{0}', space=vmem, size = 0x40000, scoped, tag = 'input window, operand 3, single buffered']
    #allocation9 [shape = 's32[1]{0}', space=sflag, size = 0x4, scoped, tag = 'scoped memory for tpu_custom_call.1']
    #allocation10 [shape = 'u8[65536]{0}', space=vmem, size = 0x10000, scoped, tag = 'input window, operand 4, single buffered']
    #allocation11 [shape = 'u8[4096]{0}', space=vmem, size = 0x1000, scoped, tag = 'output window, operand 0, single buffered']
    %10 = vsyncpa [#allocation3], 0
    %11 = vsyncpa [#allocation6], 0
    %12 = vsyncpa [#allocation9], 0
    %13 = vsyncpa [#allocation4], 0
    // Predicated region
    $region2: #{tpu_custom_call.1} parent=1 // pred_check
      _
    $region3: #{tpu_custom_call.1} parent=1 // pred_check_branch
      %15 = sbr.rel (0) target = $region5
    $region4: #{tpu_custom_call.1} parent=1 // pred_region
      %s17 = ssub.s32 128, 128
      %18 = vsyncadd [#allocation3], %s17
      %s20 = sshll.u32 [#allocation2], 4
      %s21 = int_to_ptr.vmem [resolvable:$true] %s20
      %23 = dma.hbm_to_vmem [thread:$0]  %s0, 128, %s21, [#allocation3]
    $region5: #{tpu_custom_call.1} parent=1 // pred_fallthru
      _
    // Predicated region
    $region6: #{tpu_custom_call.1} parent=1 // pred_check
      _
    $region7: #{tpu_custom_call.1} parent=1 // pred_check_branch
      %25 = sbr.rel (0) target = $region9
    $region8: #{tpu_custom_call.1} parent=1 // pred_region
      %s27 = ssub.s32 8192, 8192
      %28 = vsyncadd [#allocation6], %s27
      %s29 = sshll.u32 [#allocation5], 4
      %s30 = int_to_ptr.vmem [resolvable:$true] %s29
      %35 = dma.hbm_to_vmem [thread:$0]  %s1, 8192, %s30, [#allocation6], 512, 512, 32
    $region9: #{tpu_custom_call.1} parent=1 // pred_fallthru
      _
    // Predicated region
    $region10: #{tpu_custom_call.1} parent=1 // pred_check
      _
    $region11: #{tpu_custom_call.1} parent=1 // pred_check_branch
      %37 = sbr.rel (0) target = $region13
    $region12: #{tpu_custom_call.1} parent=1 // pred_region
      %s39 = ssub.s32 8192, 8192
      %40 = vsyncadd [#allocation6], %s39
      %s41 = sshll.u32 [#allocation7], 4
      %s42 = int_to_ptr.vmem [resolvable:$true] %s41
      %47 = dma.hbm_to_vmem [thread:$0]  %s2, 8192, %s42, [#allocation6], 512, 512, 32
    $region13: #{tpu_custom_call.1} parent=1 // pred_fallthru
      _
    // Predicated region
    $region14: #{tpu_custom_call.1} parent=1 // pred_check
      _
    $region15: #{tpu_custom_call.1} parent=1 // pred_check_branch
      %49 = sbr.rel (0) target = $region17
    $region16: #{tpu_custom_call.1} parent=1 // pred_region
      %s51 = ssub.s32 8192, 8192
      %52 = vsyncadd [#allocation9], %s51
      %s53 = sshll.u32 [#allocation8], 4
      %s54 = int_to_ptr.vmem [resolvable:$true] %s53
      %59 = dma.hbm_to_vmem [thread:$0]  %s3, 8192, %s54, [#allocation9], 512, 512, 32
    $region17: #{tpu_custom_call.1} parent=1 // pred_fallthru
      _
    // Predicated region
    $region18: #{tpu_custom_call.1} parent=1 // pred_check
      _
    $region19: #{tpu_custom_call.1} parent=1 // pred_check_branch
      %61 = sbr.rel (0) target = $region21
    $region20: #{tpu_custom_call.1} parent=1 // pred_region
      %s63 = ssub.s32 2048, 2048
      %64 = vsyncadd [#allocation9], %s63
      %s65 = sshll.u32 [#allocation10], 4
      %s66 = int_to_ptr.vmem [resolvable:$true] %s65
      %71 = dma.hbm_to_vmem [thread:$0]  %s4, 2048, %s66, [#allocation9], 128, 128, 8
    $region21: #{tpu_custom_call.1} parent=1 // pred_fallthru
      _
    // Predicated region
    $region22: #{tpu_custom_call.1} parent=1 // pred_check
      _
    $region23: #{tpu_custom_call.1} parent=1 // pred_check_branch
      %73 = sbr.rel (0) target = $region25
    $region24: #{tpu_custom_call.1} parent=1 // pred_region
      %74 = dma.done [#allocation3], 128
    $region25: #{tpu_custom_call.1} parent=1 // pred_fallthru
      _
    // Predicated region
    $region26: #{tpu_custom_call.1} parent=1 // pred_check
      _
    $region27: #{tpu_custom_call.1} parent=1 // pred_check_branch
      %76 = sbr.rel (0) target = $region29
    $region28: #{tpu_custom_call.1} parent=1 // pred_region
      %77 = dma.done [#allocation6], 8192
    $region29: #{tpu_custom_call.1} parent=1 // pred_fallthru
      _
    // Predicated region
    $region30: #{tpu_custom_call.1} parent=1 // pred_check
      _
    $region31: #{tpu_custom_call.1} parent=1 // pred_check_branch
      %79 = sbr.rel (0) target = $region33
    $region32: #{tpu_custom_call.1} parent=1 // pred_region
      %80 = dma.done [#allocation6], 8192
    $region33: #{tpu_custom_call.1} parent=1 // pred_fallthru
      _
    // Predicated region
    $region34: #{tpu_custom_call.1} parent=1 // pred_check
      _
    $region35: #{tpu_custom_call.1} parent=1 // pred_check_branch
      %82 = sbr.rel (0) target = $region37
    $region36: #{tpu_custom_call.1} parent=1 // pred_region
      %83 = dma.done [#allocation9], 8192
    $region37: #{tpu_custom_call.1} parent=1 // pred_fallthru
      _
    // Predicated region
    $region38: #{tpu_custom_call.1} parent=1 // pred_check
      _
    $region39: #{tpu_custom_call.1} parent=1 // pred_check_branch
      %85 = sbr.rel (0) target = $region41
    $region40: #{tpu_custom_call.1} parent=1 // pred_region
      %86 = dma.done [#allocation9], 2048
    $region41: #{tpu_custom_call.1} parent=1 // pred_fallthru
      _
    %v87 = vlaneseq
    %v88 = vand.u32 %v87, 127
    %vm89 = vcmp.eq.s32.totalorder %v88, 64
    %v90 = vsel %vm89, 1, 0
    %v91 = vcvt.s32.f32 %v90
    %vm92 = vcmp.eq.s32.totalorder %v88, 127
    %v93 = vsel %vm92, 1, 0
    %v94 = vcvt.s32.f32 %v93
    %v95 = vld [vmem:[#allocation2] sm:$0xff]
    %97 = vset.pattern.permute.xlu0 0
    %98 = vperm.xlu0 %97, %v95
    %v99 = vpop.permute.xlu0 %98
    %v101 = vmul.f32 %v99, %v91
    %v102 = vadd.f32 %v101, %v94
    %103 = vset.pattern.permute.xlu0 1
    %104 = vperm.xlu0 %103, %v95
    %v105 = vpop.permute.xlu0 %104
    %v107 = vmul.f32 %v105, %v91
    %v108 = vadd.f32 %v107, %v94
    %109 = vset.pattern.permute.xlu0 2
    %110 = vperm.xlu0 %109, %v95
    %v111 = vpop.permute.xlu0 %110
    %v113 = vmul.f32 %v111, %v91
    %v114 = vadd.f32 %v113, %v94
    %v115 = vld [vmem:[#allocation5] sm:$0xff]
    %v116 = vld [vmem:[#allocation5 + $0x8] sm:$0xff]
    %v117 = vld [vmem:[#allocation5 + $0x10] sm:$0xff]
    %v118 = vld [vmem:[#allocation5 + $0x18] sm:$0xff]
    %v119 = vld [vmem:[#allocation5 + $0x20] sm:$0xff]
    %v120 = vld [vmem:[#allocation5 + $0x28] sm:$0xff]
    %v121 = vld [vmem:[#allocation5 + $0x30] sm:$0xff]
    %v122 = vld [vmem:[#allocation5 + $0x38] sm:$0xff]
    %v123 = vld [vmem:[#allocation5 + $0x40] sm:$0xff]
    %v124 = vld [vmem:[#allocation5 + $0x48] sm:$0xff]
    %v125 = vld [vmem:[#allocation5 + $0x50] sm:$0xff]
    %v126 = vld [vmem:[#allocation5 + $0x58] sm:$0xff]
    %v127 = vld [vmem:[#allocation5 + $0x60] sm:$0xff]
    %v128 = vld [vmem:[#allocation5 + $0x68] sm:$0xff]
    %v129 = vld [vmem:[#allocation5 + $0x70] sm:$0xff]
    %v130 = vld [vmem:[#allocation5 + $0x78] sm:$0xff]
    %v131 = vld [vmem:[#allocation5 + $0x80] sm:$0xff]
    %v132 = vld [vmem:[#allocation5 + $0x88] sm:$0xff]
    %v133 = vld [vmem:[#allocation5 + $0x90] sm:$0xff]
    %v134 = vld [vmem:[#allocation5 + $0x98] sm:$0xff]
    %v135 = vld [vmem:[#allocation5 + $0xa0] sm:$0xff]
    %v136 = vld [vmem:[#allocation5 + $0xa8] sm:$0xff]
    %v137 = vld [vmem:[#allocation5 + $0xb0] sm:$0xff]
    %v138 = vld [vmem:[#allocation5 + $0xb8] sm:$0xff]
    %v139 = vld [vmem:[#allocation5 + $0xc0] sm:$0xff]
    %v140 = vld [vmem:[#allocation5 + $0xc8] sm:$0xff]
    %v141 = vld [vmem:[#allocation5 + $0xd0] sm:$0xff]
    %v142 = vld [vmem:[#allocation5 + $0xd8] sm:$0xff]
    %v143 = vld [vmem:[#allocation5 + $0xe0] sm:$0xff]
    %v144 = vld [vmem:[#allocation5 + $0xe8] sm:$0xff]
    %v145 = vld [vmem:[#allocation5 + $0xf0] sm:$0xff]
    %v146 = vld [vmem:[#allocation5 + $0xf8] sm:$0xff]
    %v147 = vld [vmem:[#allocation5 + $0x100] sm:$0xff]
    %v148 = vld [vmem:[#allocation5 + $0x108] sm:$0xff]
    %v149 = vld [vmem:[#allocation5 + $0x110] sm:$0xff]
    %v150 = vld [vmem:[#allocation5 + $0x118] sm:$0xff]
    %v151 = vld [vmem:[#allocation5 + $0x120] sm:$0xff]
    %v152 = vld [vmem:[#allocation5 + $0x128] sm:$0xff]
    %v153 = vld [vmem:[#allocation5 + $0x130] sm:$0xff]
    %v154 = vld [vmem:[#allocation5 + $0x138] sm:$0xff]
    %v155 = vld [vmem:[#allocation5 + $0x140] sm:$0xff]
    %v156 = vld [vmem:[#allocation5 + $0x148] sm:$0xff]
    %v157 = vld [vmem:[#allocation5 + $0x150] sm:$0xff]
    %v158 = vld [vmem:[#allocation5 + $0x158] sm:$0xff]
    %v159 = vld [vmem:[#allocation5 + $0x160] sm:$0xff]
    %v160 = vld [vmem:[#allocation5 + $0x168] sm:$0xff]
    %v161 = vld [vmem:[#allocation5 + $0x170] sm:$0xff]
    %v162 = vld [vmem:[#allocation5 + $0x178] sm:$0xff]
    %v163 = vld [vmem:[#allocation5 + $0x180] sm:$0xff]
    %v164 = vld [vmem:[#allocation5 + $0x188] sm:$0xff]
    %v165 = vld [vmem:[#allocation5 + $0x190] sm:$0xff]
    %v166 = vld [vmem:[#allocation5 + $0x198] sm:$0xff]
    %v167 = vld [vmem:[#allocation5 + $0x1a0] sm:$0xff]
    %v168 = vld [vmem:[#allocation5 + $0x1a8] sm:$0xff]
    %v169 = vld [vmem:[#allocation5 + $0x1b0] sm:$0xff]
    %v170 = vld [vmem:[#allocation5 + $0x1b8] sm:$0xff]
    %v171 = vld [vmem:[#allocation5 + $0x1c0] sm:$0xff]
    %v172 = vld [vmem:[#allocation5 + $0x1c8] sm:$0xff]
    %v173 = vld [vmem:[#allocation5 + $0x1d0] sm:$0xff]
    %v174 = vld [vmem:[#allocation5 + $0x1d8] sm:$0xff]
    %v175 = vld [vmem:[#allocation5 + $0x1e0] sm:$0xff]
    %v176 = vld [vmem:[#allocation5 + $0x1e8] sm:$0xff]
    %v177 = vld [vmem:[#allocation5 + $0x1f0] sm:$0xff]
    %v178 = vld [vmem:[#allocation5 + $0x1f8] sm:$0xff]
    %179 = vmatprep.subr.mxu0 %v176
    %180 = vmatpush1.msra.mxu0 %v175
    %181 = vmatprep.subr.mxu0 %v172
    %182 = vmatpush1.msra.mxu0 %v171
    %183 = vmatprep.subr.mxu0 %v168
    %184 = vmatpush1.msra.mxu0 %v167
    %185 = vmatprep.subr.mxu0 %v164
    %186 = vmatpush1.msra.mxu0 %v163
    %187 = vmatprep.subr.mxu0 %v160
    %188 = vmatpush1.msra.mxu0 %v159
    %189 = vmatprep.subr.mxu0 %v156
    %190 = vmatpush1.msra.mxu0 %v155
    %191 = vmatprep.subr.mxu0 %v152
    %192 = vmatpush1.msra.mxu0 %v151
    %193 = vmatprep.subr.mxu0 %v148
    %194 = vmatpush1.msra.mxu0 %v147
    %195 = vmatprep.subr.mxu0 %v144
    %196 = vmatpush1.msra.mxu0 %v143
    %197 = vmatprep.subr.mxu0 %v140
    %198 = vmatpush1.msra.mxu0 %v139
    %199 = vmatprep.subr.mxu0 %v136
    %200 = vmatpush1.msra.mxu0 %v135
    %201 = vmatprep.subr.mxu0 %v132
    %202 = vmatpush1.msra.mxu0 %v131
    %203 = vmatprep.subr.mxu0 %v128
    %204 = vmatpush1.msra.mxu0 %v127
    %205 = vmatprep.subr.mxu0 %v124
    %206 = vmatpush1.msra.mxu0 %v123
    %207 = vmatprep.subr.mxu0 %v120
    %208 = vmatpush1.msra.mxu0 %v119
    %209 = vmatprep.subr.mxu0 %v116
    %210 = vmatpush1.msra.mxu0 %v115
    %211 = vmatprep.subr.mxu0 0.0
    %212 = vmatpush2.msra.mxu0 0.0
    %213 = vmatprep.subr.mxu0 0.0
    %214 = vmatpush2.msra.mxu0 0.0
    %215 = vmatprep.subr.mxu0 0.0
    %216 = vmatpush2.msra.mxu0 0.0
    %217 = vmatprep.subr.mxu0 0.0
    %218 = vmatpush2.msra.mxu0 0.0
    %219 = vmatprep.subr.mxu0 0.0
    %220 = vmatpush2.msra.mxu0 0.0
    %221 = vmatprep.subr.mxu0 0.0
    %222 = vmatpush2.msra.mxu0 0.0
    %223 = vmatprep.subr.mxu0 0.0
    %224 = vmatpush2.msra.mxu0 0.0
    %225 = vmatprep.subr.mxu0 0.0
    %226 = vmatpush2.msra.mxu0 0.0
    %227 = vmatprep.subr.mxu0 0.0
    %228 = vmatpush2.msra.mxu0 0.0
    %229 = vmatprep.subr.mxu0 0.0
    %230 = vmatpush2.msra.mxu0 0.0
    %231 = vmatprep.subr.mxu0 0.0
    %232 = vmatpush2.msra.mxu0 0.0
    %233 = vmatprep.subr.mxu0 0.0
    %234 = vmatpush2.msra.mxu0 0.0
    %235 = vmatprep.subr.mxu0 0.0
    %236 = vmatpush2.msra.mxu0 0.0
    %237 = vmatprep.subr.mxu0 0.0
    %238 = vmatpush2.msra.mxu0 0.0
    %239 = vmatprep.subr.mxu0 0.0
    %240 = vmatpush2.msra.mxu0 0.0
    %241 = vmatprep.subr.mxu0 0.0
    %242 = vmatpush2.msra.mxu0 0.0
    %243 = vmatprep.mubr.f32.mxu0 0.0
    %244 = vmatmul.mubr.f32.gmra.mxu0 %v102
    %v245 = vpop.f32.mrf.mxu0
    %v246 = vadd.f32 0.0, %v245
    %v247 = vpop.f32.mrf.mxu0
    %248 = vdwg.mxu0
    %249 = vmatprep.subr.mxu0 %v178
    %250 = vmatpush1.msra.mxu0 %v177
    %251 = vmatprep.subr.mxu0 %v174
    %252 = vmatpush1.msra.mxu0 %v173
    %253 = vmatprep.subr.mxu0 %v170
    %254 = vmatpush1.msra.mxu0 %v169
    %255 = vmatprep.subr.mxu0 %v166
    %256 = vmatpush1.msra.mxu0 %v165
    %257 = vmatprep.subr.mxu0 %v162
    %258 = vmatpush1.msra.mxu0 %v161
    %259 = vmatprep.subr.mxu0 %v158
    %260 = vmatpush1.msra.mxu0 %v157
    %261 = vmatprep.subr.mxu0 %v154
    %262 = vmatpush1.msra.mxu0 %v153
    %263 = vmatprep.subr.mxu0 %v150
    %264 = vmatpush1.msra.mxu0 %v149
    %265 = vmatprep.subr.mxu0 %v146
    %266 = vmatpush1.msra.mxu0 %v145
    %267 = vmatprep.subr.mxu0 %v142
    %268 = vmatpush1.msra.mxu0 %v141
    %269 = vmatprep.subr.mxu0 %v138
    %270 = vmatpush1.msra.mxu0 %v137
    %271 = vmatprep.subr.mxu0 %v134
    %272 = vmatpush1.msra.mxu0 %v133
    %273 = vmatprep.subr.mxu0 %v130
    %274 = vmatpush1.msra.mxu0 %v129
    %275 = vmatprep.subr.mxu0 %v126
    %276 = vmatpush1.msra.mxu0 %v125
    %277 = vmatprep.subr.mxu0 %v122
    %278 = vmatpush1.msra.mxu0 %v121
    %279 = vmatprep.subr.mxu0 %v118
    %280 = vmatpush1.msra.mxu0 %v117
    %281 = vmatprep.subr.mxu0 0.0
    %282 = vmatpush2.msra.mxu0 0.0
    %283 = vmatprep.subr.mxu0 0.0
    %284 = vmatpush2.msra.mxu0 0.0
    %285 = vmatprep.subr.mxu0 0.0
    %286 = vmatpush2.msra.mxu0 0.0
    %287 = vmatprep.subr.mxu0 0.0
    %288 = vmatpush2.msra.mxu0 0.0
    %289 = vmatprep.subr.mxu0 0.0
    %290 = vmatpush2.msra.mxu0 0.0
    %291 = vmatprep.subr.mxu0 0.0
    %292 = vmatpush2.msra.mxu0 0.0
    %293 = vmatprep.subr.mxu0 0.0
    %294 = vmatpush2.msra.mxu0 0.0
    %295 = vmatprep.subr.mxu0 0.0
    %296 = vmatpush2.msra.mxu0 0.0
    %297 = vmatprep.subr.mxu0 0.0
    %298 = vmatpush2.msra.mxu0 0.0
    %299 = vmatprep.subr.mxu0 0.0
    %300 = vmatpush2.msra.mxu0 0.0
    %301 = vmatprep.subr.mxu0 0.0
    %302 = vmatpush2.msra.mxu0 0.0
    %303 = vmatprep.subr.mxu0 0.0
    %304 = vmatpush2.msra.mxu0 0.0
    %305 = vmatprep.subr.mxu0 0.0
    %306 = vmatpush2.msra.mxu0 0.0
    %307 = vmatprep.subr.mxu0 0.0
    %308 = vmatpush2.msra.mxu0 0.0
    %309 = vmatprep.subr.mxu0 0.0
    %310 = vmatpush2.msra.mxu0 0.0
    %311 = vmatprep.subr.mxu0 0.0
    %312 = vmatpush2.msra.mxu0 0.0
    %313 = vmatprep.mubr.f32.mxu0 0.0
    %314 = vmatmul.mubr.f32.gmra.mxu0 %v102
    %v315 = vpop.f32.mrf.mxu0
    %v316 = vadd.f32 0.0, %v315
    %v317 = vpop.f32.mrf.mxu0
    %v318 = vadd.f32 0.0, %v317
    %319 = vdwg.mxu0
    %v320 = vxor.u32 %v246, 2147483648
    %v321 = vmul.f32 %v320, 1.442695
    %v322 = vpow.pop %v321
    %v323 = vadd.f32 %v322, 1.0
    %v324 = vrcp.pop %v323
    %v325 = vmul.f32 1.0, %v324
    %v326 = vtanh.pop %v316
    %v327 = vxor.u32 %v318, 2147483648
    %v328 = vmul.f32 %v327, 1.442695
    %v329 = vpow.pop %v328
    %v330 = vadd.f32 %v329, 1.0
    %v331 = vrcp.pop %v330
    %v332 = vmul.f32 1.0, %v331
    %v333 = vmul.f32 %v325, %v326
    %v334 = vtanh.pop %v333
    %v335 = vmul.f32 %v332, %v334
    %v336 = vld [vmem:[#allocation7] sm:$0xff]
    %v337 = vld [vmem:[#allocation7 + $0x8] sm:$0xff]
    %v338 = vld [vmem:[#allocation7 + $0x10] sm:$0xff]
    %v339 = vld [vmem:[#allocation7 + $0x18] sm:$0xff]
    %v340 = vld [vmem:[#allocation7 + $0x20] sm:$0xff]
    %v341 = vld [vmem:[#allocation7 + $0x28] sm:$0xff]
    %v342 = vld [vmem:[#allocation7 + $0x30] sm:$0xff]
    %v343 = vld [vmem:[#allocation7 + $0x38] sm:$0xff]
    %v344 = vld [vmem:[#allocation7 + $0x40] sm:$0xff]
    %v345 = vld [vmem:[#allocation7 + $0x48] sm:$0xff]
    %v346 = vld [vmem:[#allocation7 + $0x50] sm:$0xff]
    %v347 = vld [vmem:[#allocation7 + $0x58] sm:$0xff]
    %v348 = vld [vmem:[#allocation7 + $0x60] sm:$0xff]
    %v349 = vld [vmem:[#allocation7 + $0x68] sm:$0xff]
    %v350 = vld [vmem:[#allocation7 + $0x70] sm:$0xff]
    %v351 = vld [vmem:[#allocation7 + $0x78] sm:$0xff]
    %v352 = vld [vmem:[#allocation7 + $0x80] sm:$0xff]
    %v353 = vld [vmem:[#allocation7 + $0x88] sm:$0xff]
    %v354 = vld [vmem:[#allocation7 + $0x90] sm:$0xff]
    %v355 = vld [vmem:[#allocation7 + $0x98] sm:$0xff]
    %v356 = vld [vmem:[#allocation7 + $0xa0] sm:$0xff]
    %v357 = vld [vmem:[#allocation7 + $0xa8] sm:$0xff]
    %v358 = vld [vmem:[#allocation7 + $0xb0] sm:$0xff]
    %v359 = vld [vmem:[#allocation7 + $0xb8] sm:$0xff]
    %v360 = vld [vmem:[#allocation7 + $0xc0] sm:$0xff]
    %v361 = vld [vmem:[#allocation7 + $0xc8] sm:$0xff]
    %v362 = vld [vmem:[#allocation7 + $0xd0] sm:$0xff]
    %v363 = vld [vmem:[#allocation7 + $0xd8] sm:$0xff]
    %v364 = vld [vmem:[#allocation7 + $0xe0] sm:$0xff]
    %v365 = vld [vmem:[#allocation7 + $0xe8] sm:$0xff]
    %v366 = vld [vmem:[#allocation7 + $0xf0] sm:$0xff]
    %v367 = vld [vmem:[#allocation7 + $0xf8] sm:$0xff]
    %v368 = vld [vmem:[#allocation7 + $0x100] sm:$0xff]
    %v369 = vld [vmem:[#allocation7 + $0x108] sm:$0xff]
    %v370 = vld [vmem:[#allocation7 + $0x110] sm:$0xff]
    %v371 = vld [vmem:[#allocation7 + $0x118] sm:$0xff]
    %v372 = vld [vmem:[#allocation7 + $0x120] sm:$0xff]
    %v373 = vld [vmem:[#allocation7 + $0x128] sm:$0xff]
    %v374 = vld [vmem:[#allocation7 + $0x130] sm:$0xff]
    %v375 = vld [vmem:[#allocation7 + $0x138] sm:$0xff]
    %v376 = vld [vmem:[#allocation7 + $0x140] sm:$0xff]
    %v377 = vld [vmem:[#allocation7 + $0x148] sm:$0xff]
    %v378 = vld [vmem:[#allocation7 + $0x150] sm:$0xff]
    %v379 = vld [vmem:[#allocation7 + $0x158] sm:$0xff]
    %v380 = vld [vmem:[#allocation7 + $0x160] sm:$0xff]
    %v381 = vld [vmem:[#allocation7 + $0x168] sm:$0xff]
    %v382 = vld [vmem:[#allocation7 + $0x170] sm:$0xff]
    %v383 = vld [vmem:[#allocation7 + $0x178] sm:$0xff]
    %v384 = vld [vmem:[#allocation7 + $0x180] sm:$0xff]
    %v385 = vld [vmem:[#allocation7 + $0x188] sm:$0xff]
    %v386 = vld [vmem:[#allocation7 + $0x190] sm:$0xff]
    %v387 = vld [vmem:[#allocation7 + $0x198] sm:$0xff]
    %v388 = vld [vmem:[#allocation7 + $0x1a0] sm:$0xff]
    %v389 = vld [vmem:[#allocation7 + $0x1a8] sm:$0xff]
    %v390 = vld [vmem:[#allocation7 + $0x1b0] sm:$0xff]
    %v391 = vld [vmem:[#allocation7 + $0x1b8] sm:$0xff]
    %v392 = vld [vmem:[#allocation7 + $0x1c0] sm:$0xff]
    %v393 = vld [vmem:[#allocation7 + $0x1c8] sm:$0xff]
    %v394 = vld [vmem:[#allocation7 + $0x1d0] sm:$0xff]
    %v395 = vld [vmem:[#allocation7 + $0x1d8] sm:$0xff]
    %v396 = vld [vmem:[#allocation7 + $0x1e0] sm:$0xff]
    %v397 = vld [vmem:[#allocation7 + $0x1e8] sm:$0xff]
    %v398 = vld [vmem:[#allocation7 + $0x1f0] sm:$0xff]
    %v399 = vld [vmem:[#allocation7 + $0x1f8] sm:$0xff]
    %v400 = vadd.f32 %v335, %v108
    %401 = vmatprep.subr.mxu0 %v397
    %402 = vmatpush1.msra.mxu0 %v396
    %403 = vmatprep.subr.mxu0 %v393
    %404 = vmatpush1.msra.mxu0 %v392
    %405 = vmatprep.subr.mxu0 %v389
    %406 = vmatpush1.msra.mxu0 %v388
    %407 = vmatprep.subr.mxu0 %v385
    %408 = vmatpush1.msra.mxu0 %v384
    %409 = vmatprep.subr.mxu0 %v381
    %410 = vmatpush1.msra.mxu0 %v380
    %411 = vmatprep.subr.mxu0 %v377
    %412 = vmatpush1.msra.mxu0 %v376
    %413 = vmatprep.subr.mxu0 %v373
    %414 = vmatpush1.msra.mxu0 %v372
    %415 = vmatprep.subr.mxu0 %v369
    %416 = vmatpush1.msra.mxu0 %v368
    %417 = vmatprep.subr.mxu0 %v365
    %418 = vmatpush1.msra.mxu0 %v364
    %419 = vmatprep.subr.mxu0 %v361
    %420 = vmatpush1.msra.mxu0 %v360
    %421 = vmatprep.subr.mxu0 %v357
    %422 = vmatpush1.msra.mxu0 %v356
    %423 = vmatprep.subr.mxu0 %v353
    %424 = vmatpush1.msra.mxu0 %v352
    %425 = vmatprep.subr.mxu0 %v349
    %426 = vmatpush1.msra.mxu0 %v348
    %427 = vmatprep.subr.mxu0 %v345
    %428 = vmatpush1.msra.mxu0 %v344
    %429 = vmatprep.subr.mxu0 %v341
    %430 = vmatpush1.msra.mxu0 %v340
    %431 = vmatprep.subr.mxu0 %v337
    %432 = vmatpush1.msra.mxu0 %v336
    %433 = vmatprep.subr.mxu0 0.0
    %434 = vmatpush2.msra.mxu0 0.0
    %435 = vmatprep.subr.mxu0 0.0
    %436 = vmatpush2.msra.mxu0 0.0
    %437 = vmatprep.subr.mxu0 0.0
    %438 = vmatpush2.msra.mxu0 0.0
    %439 = vmatprep.subr.mxu0 0.0
    %440 = vmatpush2.msra.mxu0 0.0
    %441 = vmatprep.subr.mxu0 0.0
    %442 = vmatpush2.msra.mxu0 0.0
    %443 = vmatprep.subr.mxu0 0.0
    %444 = vmatpush2.msra.mxu0 0.0
    %445 = vmatprep.subr.mxu0 0.0
    %446 = vmatpush2.msra.mxu0 0.0
    %447 = vmatprep.subr.mxu0 0.0
    %448 = vmatpush2.msra.mxu0 0.0
    %449 = vmatprep.subr.mxu0 0.0
    %450 = vmatpush2.msra.mxu0 0.0
    %451 = vmatprep.subr.mxu0 0.0
    %452 = vmatpush2.msra.mxu0 0.0
    %453 = vmatprep.subr.mxu0 0.0
    %454 = vmatpush2.msra.mxu0 0.0
    %455 = vmatprep.subr.mxu0 0.0
    %456 = vmatpush2.msra.mxu0 0.0
    %457 = vmatprep.subr.mxu0 0.0
    %458 = vmatpush2.msra.mxu0 0.0
    %459 = vmatprep.subr.mxu0 0.0
    %460 = vmatpush2.msra.mxu0 0.0
    %461 = vmatprep.subr.mxu0 0.0
    %462 = vmatpush2.msra.mxu0 0.0
    %463 = vmatprep.subr.mxu0 0.0
    %464 = vmatpush2.msra.mxu0 0.0
    %465 = vmatprep.mubr.f32.mxu0 0.0
    %466 = vmatmul.mubr.f32.gmra.mxu0 %v400
    %v467 = vpop.f32.mrf.mxu0
    %v468 = vadd.f32 0.0, %v467
    %v469 = vpop.f32.mrf.mxu0
    %v470 = vadd.f32 0.0, %v469
    %471 = vdwg.mxu0
    %472 = vmatprep.subr.mxu0 %v399
    %473 = vmatpush1.msra.mxu0 %v398
    %474 = vmatprep.subr.mxu0 %v395
    %475 = vmatpush1.msra.mxu0 %v394
    %476 = vmatprep.subr.mxu0 %v391
    %477 = vmatpush1.msra.mxu0 %v390
    %478 = vmatprep.subr.mxu0 %v387
    %479 = vmatpush1.msra.mxu0 %v386
    %480 = vmatprep.subr.mxu0 %v383
    %481 = vmatpush1.msra.mxu0 %v382
    %482 = vmatprep.subr.mxu0 %v379
    %483 = vmatpush1.msra.mxu0 %v378
    %484 = vmatprep.subr.mxu0 %v375
    %485 = vmatpush1.msra.mxu0 %v374
    %486 = vmatprep.subr.mxu0 %v371
    %487 = vmatpush1.msra.mxu0 %v370
    %488 = vmatprep.subr.mxu0 %v367
    %489 = vmatpush1.msra.mxu0 %v366
    %490 = vmatprep.subr.mxu0 %v363
    %491 = vmatpush1.msra.mxu0 %v362
    %492 = vmatprep.subr.mxu0 %v359
    %493 = vmatpush1.msra.mxu0 %v358
    %494 = vmatprep.subr.mxu0 %v355
    %495 = vmatpush1.msra.mxu0 %v354
    %496 = vmatprep.subr.mxu0 %v351
    %497 = vmatpush1.msra.mxu0 %v350
    %498 = vmatprep.subr.mxu0 %v347
    %499 = vmatpush1.msra.mxu0 %v346
    %500 = vmatprep.subr.mxu0 %v343
    %501 = vmatpush1.msra.mxu0 %v342
    %502 = vmatprep.subr.mxu0 %v339
    %503 = vmatpush1.msra.mxu0 %v338
    %504 = vmatprep.subr.mxu0 0.0
    %505 = vmatpush2.msra.mxu0 0.0
    %506 = vmatprep.subr.mxu0 0.0
    %507 = vmatpush2.msra.mxu0 0.0
    %508 = vmatprep.subr.mxu0 0.0
    %509 = vmatpush2.msra.mxu0 0.0
    %510 = vmatprep.subr.mxu0 0.0
    %511 = vmatpush2.msra.mxu0 0.0
    %512 = vmatprep.subr.mxu0 0.0
    %513 = vmatpush2.msra.mxu0 0.0
    %514 = vmatprep.subr.mxu0 0.0
    %515 = vmatpush2.msra.mxu0 0.0
    %516 = vmatprep.subr.mxu0 0.0
    %517 = vmatpush2.msra.mxu0 0.0
    %518 = vmatprep.subr.mxu0 0.0
    %519 = vmatpush2.msra.mxu0 0.0
    %520 = vmatprep.subr.mxu0 0.0
    %521 = vmatpush2.msra.mxu0 0.0
    %522 = vmatprep.subr.mxu0 0.0
    %523 = vmatpush2.msra.mxu0 0.0
    %524 = vmatprep.subr.mxu0 0.0
    %525 = vmatpush2.msra.mxu0 0.0
    %526 = vmatprep.subr.mxu0 0.0
    %527 = vmatpush2.msra.mxu0 0.0
    %528 = vmatprep.subr.mxu0 0.0
    %529 = vmatpush2.msra.mxu0 0.0
    %530 = vmatprep.subr.mxu0 0.0
    %531 = vmatpush2.msra.mxu0 0.0
    %532 = vmatprep.subr.mxu0 0.0
    %533 = vmatpush2.msra.mxu0 0.0
    %534 = vmatprep.subr.mxu0 0.0
    %535 = vmatpush2.msra.mxu0 0.0
    %536 = vmatprep.mubr.f32.mxu0 0.0
    %537 = vmatmul.mubr.f32.gmra.mxu0 %v400
    %v538 = vpop.f32.mrf.mxu0
    %v539 = vadd.f32 0.0, %v538
    %v540 = vpop.f32.mrf.mxu0
    %v541 = vadd.f32 0.0, %v540
    %542 = vdwg.mxu0
    %v543 = vxor.u32 %v468, 2147483648
    %v544 = vmul.f32 %v543, 1.442695
    %v545 = vpow.pop %v544
    %v546 = vadd.f32 %v545, 1.0
    %v547 = vrcp.pop %v546
    %v548 = vmul.f32 1.0, %v547
    %v549 = vxor.u32 %v470, 2147483648
    %v550 = vmul.f32 %v549, 1.442695
    %v551 = vpow.pop %v550
    %v552 = vadd.f32 %v551, 1.0
    %v553 = vrcp.pop %v552
    %v554 = vmul.f32 1.0, %v553
    %v555 = vtanh.pop %v539
    %v556 = vxor.u32 %v541, 2147483648
    %v557 = vmul.f32 %v556, 1.442695
    %v558 = vpow.pop %v557
    %v559 = vadd.f32 %v558, 1.0
    %v560 = vrcp.pop %v559
    %v561 = vmul.f32 1.0, %v560
    %v562 = vmul.f32 %v554, %v333
    %v563 = vmul.f32 %v548, %v555
    %v564 = vadd.f32 %v562, %v563
    %v565 = vtanh.pop %v564
    %v566 = vmul.f32 %v561, %v565
    %v567 = vld [vmem:[#allocation8] sm:$0xff]
    %v568 = vld [vmem:[#allocation8 + $0x8] sm:$0xff]
    %v569 = vld [vmem:[#allocation8 + $0x10] sm:$0xff]
    %v570 = vld [vmem:[#allocation8 + $0x18] sm:$0xff]
    %v571 = vld [vmem:[#allocation8 + $0x20] sm:$0xff]
    %v572 = vld [vmem:[#allocation8 + $0x28] sm:$0xff]
    %v573 = vld [vmem:[#allocation8 + $0x30] sm:$0xff]
    %v574 = vld [vmem:[#allocation8 + $0x38] sm:$0xff]
    %v575 = vld [vmem:[#allocation8 + $0x40] sm:$0xff]
    %v576 = vld [vmem:[#allocation8 + $0x48] sm:$0xff]
    %v577 = vld [vmem:[#allocation8 + $0x50] sm:$0xff]
    %v578 = vld [vmem:[#allocation8 + $0x58] sm:$0xff]
    %v579 = vld [vmem:[#allocation8 + $0x60] sm:$0xff]
    %v580 = vld [vmem:[#allocation8 + $0x68] sm:$0xff]
    %v581 = vld [vmem:[#allocation8 + $0x70] sm:$0xff]
    %v582 = vld [vmem:[#allocation8 + $0x78] sm:$0xff]
    %v583 = vld [vmem:[#allocation8 + $0x80] sm:$0xff]
    %v584 = vld [vmem:[#allocation8 + $0x88] sm:$0xff]
    %v585 = vld [vmem:[#allocation8 + $0x90] sm:$0xff]
    %v586 = vld [vmem:[#allocation8 + $0x98] sm:$0xff]
    %v587 = vld [vmem:[#allocation8 + $0xa0] sm:$0xff]
    %v588 = vld [vmem:[#allocation8 + $0xa8] sm:$0xff]
    %v589 = vld [vmem:[#allocation8 + $0xb0] sm:$0xff]
    %v590 = vld [vmem:[#allocation8 + $0xb8] sm:$0xff]
    %v591 = vld [vmem:[#allocation8 + $0xc0] sm:$0xff]
    %v592 = vld [vmem:[#allocation8 + $0xc8] sm:$0xff]
    %v593 = vld [vmem:[#allocation8 + $0xd0] sm:$0xff]
    %v594 = vld [vmem:[#allocation8 + $0xd8] sm:$0xff]
    %v595 = vld [vmem:[#allocation8 + $0xe0] sm:$0xff]
    %v596 = vld [vmem:[#allocation8 + $0xe8] sm:$0xff]
    %v597 = vld [vmem:[#allocation8 + $0xf0] sm:$0xff]
    %v598 = vld [vmem:[#allocation8 + $0xf8] sm:$0xff]
    %v599 = vld [vmem:[#allocation8 + $0x100] sm:$0xff]
    %v600 = vld [vmem:[#allocation8 + $0x108] sm:$0xff]
    %v601 = vld [vmem:[#allocation8 + $0x110] sm:$0xff]
    %v602 = vld [vmem:[#allocation8 + $0x118] sm:$0xff]
    %v603 = vld [vmem:[#allocation8 + $0x120] sm:$0xff]
    %v604 = vld [vmem:[#allocation8 + $0x128] sm:$0xff]
    %v605 = vld [vmem:[#allocation8 + $0x130] sm:$0xff]
    %v606 = vld [vmem:[#allocation8 + $0x138] sm:$0xff]
    %v607 = vld [vmem:[#allocation8 + $0x140] sm:$0xff]
    %v608 = vld [vmem:[#allocation8 + $0x148] sm:$0xff]
    %v609 = vld [vmem:[#allocation8 + $0x150] sm:$0xff]
    %v610 = vld [vmem:[#allocation8 + $0x158] sm:$0xff]
    %v611 = vld [vmem:[#allocation8 + $0x160] sm:$0xff]
    %v612 = vld [vmem:[#allocation8 + $0x168] sm:$0xff]
    %v613 = vld [vmem:[#allocation8 + $0x170] sm:$0xff]
    %v614 = vld [vmem:[#allocation8 + $0x178] sm:$0xff]
    %v615 = vld [vmem:[#allocation8 + $0x180] sm:$0xff]
    %v616 = vld [vmem:[#allocation8 + $0x188] sm:$0xff]
    %v617 = vld [vmem:[#allocation8 + $0x190] sm:$0xff]
    %v618 = vld [vmem:[#allocation8 + $0x198] sm:$0xff]
    %v619 = vld [vmem:[#allocation8 + $0x1a0] sm:$0xff]
    %v620 = vld [vmem:[#allocation8 + $0x1a8] sm:$0xff]
    %v621 = vld [vmem:[#allocation8 + $0x1b0] sm:$0xff]
    %v622 = vld [vmem:[#allocation8 + $0x1b8] sm:$0xff]
    %v623 = vld [vmem:[#allocation8 + $0x1c0] sm:$0xff]
    %v624 = vld [vmem:[#allocation8 + $0x1c8] sm:$0xff]
    %v625 = vld [vmem:[#allocation8 + $0x1d0] sm:$0xff]
    %v626 = vld [vmem:[#allocation8 + $0x1d8] sm:$0xff]
    %v627 = vld [vmem:[#allocation8 + $0x1e0] sm:$0xff]
    %v628 = vld [vmem:[#allocation8 + $0x1e8] sm:$0xff]
    %v629 = vld [vmem:[#allocation8 + $0x1f0] sm:$0xff]
    %v630 = vld [vmem:[#allocation8 + $0x1f8] sm:$0xff]
    %v631 = vadd.f32 %v566, %v114
    %632 = vmatprep.subr.mxu0 %v628
    %633 = vmatpush1.msra.mxu0 %v627
    %634 = vmatprep.subr.mxu0 %v624
    %635 = vmatpush1.msra.mxu0 %v623
    %636 = vmatprep.subr.mxu0 %v620
    %637 = vmatpush1.msra.mxu0 %v619
    %638 = vmatprep.subr.mxu0 %v616
    %639 = vmatpush1.msra.mxu0 %v615
    %640 = vmatprep.subr.mxu0 %v612
    %641 = vmatpush1.msra.mxu0 %v611
    %642 = vmatprep.subr.mxu0 %v608
    %643 = vmatpush1.msra.mxu0 %v607
    %644 = vmatprep.subr.mxu0 %v604
    %645 = vmatpush1.msra.mxu0 %v603
    %646 = vmatprep.subr.mxu0 %v600
    %647 = vmatpush1.msra.mxu0 %v599
    %648 = vmatprep.subr.mxu0 %v596
    %649 = vmatpush1.msra.mxu0 %v595
    %650 = vmatprep.subr.mxu0 %v592
    %651 = vmatpush1.msra.mxu0 %v591
    %652 = vmatprep.subr.mxu0 %v588
    %653 = vmatpush1.msra.mxu0 %v587
    %654 = vmatprep.subr.mxu0 %v584
    %655 = vmatpush1.msra.mxu0 %v583
    %656 = vmatprep.subr.mxu0 %v580
    %657 = vmatpush1.msra.mxu0 %v579
    %658 = vmatprep.subr.mxu0 %v576
    %659 = vmatpush1.msra.mxu0 %v575
    %660 = vmatprep.subr.mxu0 %v572
    %661 = vmatpush1.msra.mxu0 %v571
    %662 = vmatprep.subr.mxu0 %v568
    %663 = vmatpush1.msra.mxu0 %v567
    %664 = vmatprep.subr.mxu0 0.0
    %665 = vmatpush2.msra.mxu0 0.0
    %666 = vmatprep.subr.mxu0 0.0
    %667 = vmatpush2.msra.mxu0 0.0
    %668 = vmatprep.subr.mxu0 0.0
    %669 = vmatpush2.msra.mxu0 0.0
    %670 = vmatprep.subr.mxu0 0.0
    %671 = vmatpush2.msra.mxu0 0.0
    %672 = vmatprep.subr.mxu0 0.0
    %673 = vmatpush2.msra.mxu0 0.0
    %674 = vmatprep.subr.mxu0 0.0
    %675 = vmatpush2.msra.mxu0 0.0
    %676 = vmatprep.subr.mxu0 0.0
    %677 = vmatpush2.msra.mxu0 0.0
    %678 = vmatprep.subr.mxu0 0.0
    %679 = vmatpush2.msra.mxu0 0.0
    %680 = vmatprep.subr.mxu0 0.0
    %681 = vmatpush2.msra.mxu0 0.0
    %682 = vmatprep.subr.mxu0 0.0
    %683 = vmatpush2.msra.mxu0 0.0
    %684 = vmatprep.subr.mxu0 0.0
    %685 = vmatpush2.msra.mxu0 0.0
    %686 = vmatprep.subr.mxu0 0.0
    %687 = vmatpush2.msra.mxu0 0.0
    %688 = vmatprep.subr.mxu0 0.0
    %689 = vmatpush2.msra.mxu0 0.0
    %690 = vmatprep.subr.mxu0 0.0
    %691 = vmatpush2.msra.mxu0 0.0
    %692 = vmatprep.subr.mxu0 0.0
    %693 = vmatpush2.msra.mxu0 0.0
    %694 = vmatprep.subr.mxu0 0.0
    %695 = vmatpush2.msra.mxu0 0.0
    %696 = vmatprep.mubr.f32.mxu0 0.0
    %697 = vmatmul.mubr.f32.gmra.mxu0 %v631
    %v698 = vpop.f32.mrf.mxu0
    %v699 = vadd.f32 0.0, %v698
    %v700 = vpop.f32.mrf.mxu0
    %v701 = vadd.f32 0.0, %v700
    %702 = vdwg.mxu0
    %703 = vmatprep.subr.mxu0 %v630
    %704 = vmatpush1.msra.mxu0 %v629
    %705 = vmatprep.subr.mxu0 %v626
    %706 = vmatpush1.msra.mxu0 %v625
    %707 = vmatprep.subr.mxu0 %v622
    %708 = vmatpush1.msra.mxu0 %v621
    %709 = vmatprep.subr.mxu0 %v618
    %710 = vmatpush1.msra.mxu0 %v617
    %711 = vmatprep.subr.mxu0 %v614
    %712 = vmatpush1.msra.mxu0 %v613
    %713 = vmatprep.subr.mxu0 %v610
    %714 = vmatpush1.msra.mxu0 %v609
    %715 = vmatprep.subr.mxu0 %v606
    %716 = vmatpush1.msra.mxu0 %v605
    %717 = vmatprep.subr.mxu0 %v602
    %718 = vmatpush1.msra.mxu0 %v601
    %719 = vmatprep.subr.mxu0 %v598
    %720 = vmatpush1.msra.mxu0 %v597
    %721 = vmatprep.subr.mxu0 %v594
    %722 = vmatpush1.msra.mxu0 %v593
    %723 = vmatprep.subr.mxu0 %v590
    %724 = vmatpush1.msra.mxu0 %v589
    %725 = vmatprep.subr.mxu0 %v586
    %726 = vmatpush1.msra.mxu0 %v585
    %727 = vmatprep.subr.mxu0 %v582
    %728 = vmatpush1.msra.mxu0 %v581
    %729 = vmatprep.subr.mxu0 %v578
    %730 = vmatpush1.msra.mxu0 %v577
    %731 = vmatprep.subr.mxu0 %v574
    %732 = vmatpush1.msra.mxu0 %v573
    %733 = vmatprep.subr.mxu0 %v570
    %734 = vmatpush1.msra.mxu0 %v569
    %735 = vmatprep.subr.mxu0 0.0
    %736 = vmatpush2.msra.mxu0 0.0
    %737 = vmatprep.subr.mxu0 0.0
    %738 = vmatpush2.msra.mxu0 0.0
    %739 = vmatprep.subr.mxu0 0.0
    %740 = vmatpush2.msra.mxu0 0.0
    %741 = vmatprep.subr.mxu0 0.0
    %742 = vmatpush2.msra.mxu0 0.0
    %743 = vmatprep.subr.mxu0 0.0
    %744 = vmatpush2.msra.mxu0 0.0
    %745 = vmatprep.subr.mxu0 0.0
    %746 = vmatpush2.msra.mxu0 0.0
    %747 = vmatprep.subr.mxu0 0.0
    %748 = vmatpush2.msra.mxu0 0.0
    %749 = vmatprep.subr.mxu0 0.0
    %750 = vmatpush2.msra.mxu0 0.0
    %751 = vmatprep.subr.mxu0 0.0
    %752 = vmatpush2.msra.mxu0 0.0
    %753 = vmatprep.subr.mxu0 0.0
    %754 = vmatpush2.msra.mxu0 0.0
    %755 = vmatprep.subr.mxu0 0.0
    %756 = vmatpush2.msra.mxu0 0.0
    %757 = vmatprep.subr.mxu0 0.0
    %758 = vmatpush2.msra.mxu0 0.0
    %759 = vmatprep.subr.mxu0 0.0
    %760 = vmatpush2.msra.mxu0 0.0
    %761 = vmatprep.subr.mxu0 0.0
    %762 = vmatpush2.msra.mxu0 0.0
    %763 = vmatprep.subr.mxu0 0.0
    %764 = vmatpush2.msra.mxu0 0.0
    %765 = vmatprep.subr.mxu0 0.0
    %766 = vmatpush2.msra.mxu0 0.0
    %767 = vmatprep.mubr.f32.mxu0 0.0
    %768 = vmatmul.mubr.f32.gmra.mxu0 %v631
    %v769 = vpop.f32.mrf.mxu0
    %v770 = vadd.f32 0.0, %v769
    %v771 = vpop.f32.mrf.mxu0
    %v772 = vadd.f32 0.0, %v771
    %773 = vdwg.mxu0
    %v774 = vxor.u32 %v699, 2147483648
    %v775 = vmul.f32 %v774, 1.442695
    %v776 = vpow.pop %v775
    %v777 = vadd.f32 %v776, 1.0
    %v778 = vrcp.pop %v777
    %v779 = vmul.f32 1.0, %v778
    %v780 = vxor.u32 %v701, 2147483648
    %v781 = vmul.f32 %v780, 1.442695
    %v782 = vpow.pop %v781
    %v783 = vadd.f32 %v782, 1.0
    %v784 = vrcp.pop %v783
    %v785 = vmul.f32 1.0, %v784
    %v786 = vtanh.pop %v770
    %v787 = vxor.u32 %v772, 2147483648
    %v788 = vmul.f32 %v787, 1.442695
    %v789 = vpow.pop %v788
    %v790 = vadd.f32 %v789, 1.0
    %v791 = vrcp.pop %v790
    %v792 = vmul.f32 1.0, %v791
    %v793 = vmul.f32 %v785, %v564
    %v794 = vmul.f32 %v779, %v786
    %v795 = vadd.f32 %v793, %v794
    %v796 = vtanh.pop %v795
    %v797 = vmul.f32 %v792, %v796
    %v798 = vadd.f32 %v797, %v94
    %v799 = vld [vmem:[#allocation10] sm:$0xff]
    %v800 = vld [vmem:[#allocation10 + $0x8] sm:$0xff]
    %v801 = vld [vmem:[#allocation10 + $0x10] sm:$0xff]
    %v802 = vld [vmem:[#allocation10 + $0x18] sm:$0xff]
    %v803 = vld [vmem:[#allocation10 + $0x20] sm:$0xff]
    %v804 = vld [vmem:[#allocation10 + $0x28] sm:$0xff]
    %v805 = vld [vmem:[#allocation10 + $0x30] sm:$0xff]
    %v806 = vld [vmem:[#allocation10 + $0x38] sm:$0xff]
    %v807 = vld [vmem:[#allocation10 + $0x40] sm:$0xff]
    %v808 = vld [vmem:[#allocation10 + $0x48] sm:$0xff]
    %v809 = vld [vmem:[#allocation10 + $0x50] sm:$0xff]
    %v810 = vld [vmem:[#allocation10 + $0x58] sm:$0xff]
    %v811 = vld [vmem:[#allocation10 + $0x60] sm:$0xff]
    %v812 = vld [vmem:[#allocation10 + $0x68] sm:$0xff]
    %v813 = vld [vmem:[#allocation10 + $0x70] sm:$0xff]
    %v814 = vld [vmem:[#allocation10 + $0x78] sm:$0xff]
    %815 = vmatprep.subr.mxu0 0.0
    %816 = vmatpush1.msra.mxu0 %v814
    %817 = vmatprep.subr.mxu0 0.0
    %818 = vmatpush1.msra.mxu0 %v813
    %819 = vmatprep.subr.mxu0 0.0
    %820 = vmatpush1.msra.mxu0 %v812
    %821 = vmatprep.subr.mxu0 0.0
    %822 = vmatpush1.msra.mxu0 %v811
    %823 = vmatprep.subr.mxu0 0.0
    %824 = vmatpush1.msra.mxu0 %v810
    %825 = vmatprep.subr.mxu0 0.0
    %826 = vmatpush1.msra.mxu0 %v809
    %827 = vmatprep.subr.mxu0 0.0
    %828 = vmatpush1.msra.mxu0 %v808
    %829 = vmatprep.subr.mxu0 0.0
    %830 = vmatpush1.msra.mxu0 %v807
    %831 = vmatprep.subr.mxu0 0.0
    %832 = vmatpush1.msra.mxu0 %v806
    %833 = vmatprep.subr.mxu0 0.0
    %834 = vmatpush1.msra.mxu0 %v805
    %835 = vmatprep.subr.mxu0 0.0
    %836 = vmatpush1.msra.mxu0 %v804
    %837 = vmatprep.subr.mxu0 0.0
    %838 = vmatpush1.msra.mxu0 %v803
    %839 = vmatprep.subr.mxu0 0.0
    %840 = vmatpush1.msra.mxu0 %v802
    %841 = vmatprep.subr.mxu0 0.0
    %842 = vmatpush1.msra.mxu0 %v801
    %843 = vmatprep.subr.mxu0 0.0
    %844 = vmatpush1.msra.mxu0 %v800
    %845 = vmatprep.subr.mxu0 0.0
    %846 = vmatpush1.msra.mxu0 %v799
    %847 = vmatprep.subr.mxu0 0.0
    %848 = vmatpush2.msra.mxu0 0.0
    %849 = vmatprep.subr.mxu0 0.0
    %850 = vmatpush2.msra.mxu0 0.0
    %851 = vmatprep.subr.mxu0 0.0
    %852 = vmatpush2.msra.mxu0 0.0
    %853 = vmatprep.subr.mxu0 0.0
    %854 = vmatpush2.msra.mxu0 0.0
    %855 = vmatprep.subr.mxu0 0.0
    %856 = vmatpush2.msra.mxu0 0.0
    %857 = vmatprep.subr.mxu0 0.0
    %858 = vmatpush2.msra.mxu0 0.0
    %859 = vmatprep.subr.mxu0 0.0
    %860 = vmatpush2.msra.mxu0 0.0
    %861 = vmatprep.subr.mxu0 0.0
    %862 = vmatpush2.msra.mxu0 0.0
    %863 = vmatprep.subr.mxu0 0.0
    %864 = vmatpush2.msra.mxu0 0.0
    %865 = vmatprep.subr.mxu0 0.0
    %866 = vmatpush2.msra.mxu0 0.0
    %867 = vmatprep.subr.mxu0 0.0
    %868 = vmatpush2.msra.mxu0 0.0
    %869 = vmatprep.subr.mxu0 0.0
    %870 = vmatpush2.msra.mxu0 0.0
    %871 = vmatprep.subr.mxu0 0.0
    %872 = vmatpush2.msra.mxu0 0.0
    %873 = vmatprep.subr.mxu0 0.0
    %874 = vmatpush2.msra.mxu0 0.0
    %875 = vmatprep.subr.mxu0 0.0
    %876 = vmatpush2.msra.mxu0 0.0
    %877 = vmatprep.subr.mxu0 0.0
    %878 = vmatpush2.msra.mxu0 0.0
    %879 = vmatprep.mubr.f32.mxu0 0.0
    %880 = vmatmul.mubr.f32.gmra.mxu0 %v798
    %v881 = vpop.f32.mrf.mxu0
    %v882 = vadd.f32 0.0, %v881
    %v883 = vpop.f32.mrf.mxu0
    %884 = vdwg.mxu0
    %885 = vst [vmem:[#allocation11] sm:$0xff] %v882
    // Predicated region
    $region42: #{tpu_custom_call.1} parent=1 // pred_check
      _
    $region43: #{tpu_custom_call.1} parent=1 // pred_check_branch
      %887 = sbr.rel (0) target = $region45
    $region44: #{tpu_custom_call.1} parent=1 // pred_region
      %s889 = ssub.s32 128, 128
      %890 = vsyncadd [#allocation4], %s889
      %s892 = sshll.u32 [#allocation11], 4
      %s893 = int_to_ptr.vmem [resolvable:$true] %s892
      %895 = dma.vmem_to_hbm [thread:$0]  %s893, 128, %s5, [#allocation4]
    $region45: #{tpu_custom_call.1} parent=1 // pred_fallthru
      _
    // Predicated region
    $region46: #{tpu_custom_call.1} parent=1 // pred_check
      _
    $region47: #{tpu_custom_call.1} parent=1 // pred_check_branch
      %897 = sbr.rel (0) target = $region49
    $region48: #{tpu_custom_call.1} parent=1 // pred_region
      %898 = dma.done [#allocation4], 128
    $region49: #{tpu_custom_call.1} parent=1 // pred_fallthru
      _
    %899 = vsyncpa [#allocation3], 1
    %900 = vsyncpa [#allocation6], 1
    %901 = vsyncpa [#allocation9], 1
    %902 = vsyncpa [#allocation4], 1

</llo_original>
